<compile_context>
chip_gen: v7x
topology: tpu7x:2x2x1
jax: 0.10.0
libtpu: 0.0.40
codegen_flags: <defaults>
</compile_context>

<pallas_src>
import jax
import jax.numpy as jnp
from jax.experimental import pallas as pl
from jax.experimental.pallas import tpu as pltpu


# ----------------------------------------------------------------------------
# Shared-weight temporal linear:
#   out[b, t, f] = sum_l W[t, l] * x[b, l, f] + bias[t]
# ----------------------------------------------------------------------------
def _shared_temporal_kernel(x_ref, w_ref, b_ref, o_ref):
    x = x_ref[0]                                               # (L, f_tile)
    w = w_ref[...]                                             # (T, L)
    h = jnp.dot(w, x, preferred_element_type=jnp.float32)      # (T, f_tile)
    o_ref[0] = (h + b_ref[...]).astype(o_ref.dtype)            # bias (T, 1)


def shared_temporal(x, w, b):
    """x: [B, L, F], w: [T, L], b: [T, 1] -> [B, T, F] (lane-dense output)."""
    B, L, F = x.shape
    T = w.shape[0]
    # Full F when it comfortably fits; otherwise a 128-multiple lane tile.
    f_tile = F if F <= 1024 else 512
    nf = pl.cdiv(F, f_tile)
    return pl.pallas_call(
        _shared_temporal_kernel,
        out_shape=jax.ShapeDtypeStruct((B, T, F), x.dtype),
        grid_spec=pltpu.PrefetchScalarGridSpec(
            num_scalar_prefetch=0,
            grid=(B, nf),
            in_specs=[
                pl.BlockSpec((1, L, f_tile), lambda b, f: (b, 0, f)),
                pl.BlockSpec((T, L), lambda b, f: (0, 0)),   # grid-invariant
                pl.BlockSpec((T, 1), lambda b, f: (0, 0)),
            ],
            out_specs=pl.BlockSpec((1, T, f_tile), lambda b, f: (b, 0, f)),
        ),
        compiler_params=pltpu.CompilerParams(
            dimension_semantics=("parallel", "parallel")),
    )(x, w, b)


# ----------------------------------------------------------------------------
# Shared-weight temporal linear with the output-dim matching layer fused:
#   h[t, f]   = sum_l W[t, l] * x[b, l, f] + bias[t]
#   out[t, o] = sum_f h[t, f] * Wm_t[f, o] + bm[o]
# ----------------------------------------------------------------------------
def _shared_fused_kernel(x_ref, w_ref, b_ref, wm_ref, bm_ref, o_ref):
    x = x_ref[0]                                               # (L, F)
    h = jnp.dot(w_ref[...], x, preferred_element_type=jnp.float32)
    h = h + b_ref[...]                                         # (T, F)
    out = jnp.dot(h.astype(wm_ref.dtype), wm_ref[...],
                  preferred_element_type=jnp.float32)          # (T, O)
    o_ref[0] = (out + bm_ref[...]).astype(o_ref.dtype)


def shared_temporal_fused(x, w, b, wm_t, bm):
    """x: [B, L, F], w: [T, L], b: [T, 1], wm_t: [F, O], bm: [1, O] -> [B, T, O]."""
    B, L, F = x.shape
    T = w.shape[0]
    O = wm_t.shape[1]
    return pl.pallas_call(
        _shared_fused_kernel,
        out_shape=jax.ShapeDtypeStruct((B, T, O), x.dtype),
        grid_spec=pltpu.PrefetchScalarGridSpec(
            num_scalar_prefetch=0,
            grid=(B,),
            in_specs=[
                pl.BlockSpec((1, L, F), lambda b: (b, 0, 0)),
                pl.BlockSpec((T, L), lambda b: (0, 0)),
                pl.BlockSpec((T, 1), lambda b: (0, 0)),
                pl.BlockSpec((F, O), lambda b: (0, 0)),
                pl.BlockSpec((1, O), lambda b: (0, 0)),
            ],
            out_specs=pl.BlockSpec((1, T, O), lambda b: (b, 0, 0)),
        ),
        compiler_params=pltpu.CompilerParams(
            dimension_semantics=("parallel",)),
    )(x, w, b, wm_t, bm)


# ----------------------------------------------------------------------------
# Per-feature ("individual") temporal linear.
#   out[f, b, t] = sum_l x[f, b, l] * W[f, t, l] + bias[f, 0, t]
# Batched matmul with the batch B on the MXU M dimension; F tiled in the grid.
# ----------------------------------------------------------------------------
def _individual_temporal_kernel(x_ref, w_ref, b_ref, o_ref):
    x = x_ref[...]                                             # (f_tile, B, L)
    w = w_ref[...]                                             # (f_tile, T, L)
    y = jnp.einsum("fbl,ftl->fbt", x, w,
                   preferred_element_type=jnp.float32)         # (f_tile, B, T)
    o_ref[...] = (y + b_ref[...]).astype(o_ref.dtype)          # bias (f_tile, 1, T)


def individual_temporal(x_f, w, b):
    """x_f: [F, B, L], w: [F, T, L], b: [F, 1, T] -> [F, B, T]."""
    F, B, L = x_f.shape
    T = w.shape[1]
    itemsize = jnp.dtype(x_f.dtype).itemsize
    # Keep each streamed tile (weight / x / out) around <= 4 MiB so the
    # double-buffered blocks stay well under the 32 MiB scoped-VMEM limit we
    # request (safe on v5e/v6e/v7x; the full [F, T, L] weight is never loaded
    # at once).
    per_f_bytes = max(T * L, B * L, B * T) * itemsize
    f_tile = max(1, min(F, (4 * 1024 * 1024) // max(per_f_bytes, 1)))
    nf = pl.cdiv(F, f_tile)
    return pl.pallas_call(
        _individual_temporal_kernel,
        out_shape=jax.ShapeDtypeStruct((F, B, T), x_f.dtype),
        grid_spec=pltpu.PrefetchScalarGridSpec(
            num_scalar_prefetch=0,
            grid=(nf,),
            in_specs=[
                pl.BlockSpec((f_tile, B, L), lambda i: (i, 0, 0)),
                pl.BlockSpec((f_tile, T, L), lambda i: (i, 0, 0)),
                pl.BlockSpec((f_tile, 1, T), lambda i: (i, 0, 0)),
            ],
            out_specs=pl.BlockSpec((f_tile, B, T), lambda i: (i, 0, 0)),
        ),
        compiler_params=pltpu.CompilerParams(
            dimension_semantics=("parallel",),
            vmem_limit_bytes=32 * 1024 * 1024),
    )(x_f, w, b)


# ----------------------------------------------------------------------------
# Output-dim matching linear with B*T folded into the MXU M dimension.
#   out[m, o] = sum_f y[m, f] * Wm_t[f, o] + bm[o]
# ----------------------------------------------------------------------------
def _matching_kernel(y_ref, wm_ref, bm_ref, o_ref):
    out = jnp.dot(y_ref[...], wm_ref[...], preferred_element_type=jnp.float32)
    o_ref[...] = (out + bm_ref[...]).astype(o_ref.dtype)


def matching_linear(y2d, wm_t, bm):
    """y2d: [M, F], wm_t: [F, O], bm: [1, O] -> [M, O]."""
    M, F = y2d.shape
    O = wm_t.shape[1]
    m_tile = M if M <= 512 else 512          # 512 is a multiple of 8
    nm = pl.cdiv(M, m_tile)
    return pl.pallas_call(
        _matching_kernel,
        out_shape=jax.ShapeDtypeStruct((M, O), y2d.dtype),
        grid_spec=pltpu.PrefetchScalarGridSpec(
            num_scalar_prefetch=0,
            grid=(nm,),
            in_specs=[
                pl.BlockSpec((m_tile, F), lambda i: (i, 0)),
                pl.BlockSpec((F, O), lambda i: (0, 0)),
                pl.BlockSpec((1, O), lambda i: (0, 0)),
            ],
            out_specs=pl.BlockSpec((m_tile, O), lambda i: (i, 0)),
        ),
        compiler_params=pltpu.CompilerParams(
            dimension_semantics=("parallel",)),
    )(y2d, wm_t, bm)


# ----------------------------------------------------------------------------
# Module-equivalent wrapper
# ----------------------------------------------------------------------------
class LTSFLinear:
    def __init__(self, feature_lags, target_lags, n_features, individual,
                 output_size=None, key=None, dtype=jnp.float32):
        self.feature_lags = feature_lags
        self.target_lags = target_lags
        self.n_features = n_features
        self.individual = individual
        self.use_matching_layer = (output_size is not None
                                   and output_size != n_features)
        if key is None:
            key = jax.random.PRNGKey(0)
        k1, k2, k3, k4 = jax.random.split(key, 4)

        bound_t = 1.0 / (feature_lags ** 0.5)
        if individual:
            # Per-feature weights [F, T, L]; bias stored as [F, 1, T] so it
            # broadcasts over the batch inside the kernel.
            self.w = jax.random.uniform(
                k1, (n_features, target_lags, feature_lags),
                minval=-bound_t, maxval=bound_t, dtype=dtype)
            self.b = jax.random.uniform(
                k2, (n_features, 1, target_lags),
                minval=-bound_t, maxval=bound_t, dtype=dtype)
        else:
            # Shared weight [T, L]; bias [T, 1].  NOT broadcast F-fold.
            self.w = jax.random.uniform(
                k1, (target_lags, feature_lags),
                minval=-bound_t, maxval=bound_t, dtype=dtype)
            self.b = jax.random.uniform(
                k2, (target_lags, 1),
                minval=-bound_t, maxval=bound_t, dtype=dtype)

        if self.use_matching_layer:
            bound_m = 1.0 / (n_features ** 0.5)
            # Stored pre-transposed as [F, O] so kernels contract over F
            # without any in-kernel transpose.
            self.wm_t = jax.random.uniform(
                k3, (n_features, output_size),
                minval=-bound_m, maxval=bound_m, dtype=dtype)
            self.bm = jax.random.uniform(
                k4, (1, output_size),
                minval=-bound_m, maxval=bound_m, dtype=dtype)

    def __call__(self, x):
        # x: [B, feature_lags, n_features]  (PyTorch convention)
        B = x.shape[0]
        if self.individual:
            x_f = jnp.transpose(x, (2, 0, 1))                 # [F, B, L]
            y_f = individual_temporal(x_f, self.w, self.b)    # [F, B, T]
            if self.use_matching_layer:
                y2d = jnp.transpose(y_f, (1, 2, 0)).reshape(
                    B * self.target_lags, self.n_features)    # [B*T, F]
                out = matching_linear(y2d, self.wm_t, self.bm)
                return out.reshape(B, self.target_lags, -1)   # [B, T, O]
            return jnp.transpose(y_f, (1, 2, 0))              # [B, T, F]
        else:
            if self.use_matching_layer:
                return shared_temporal_fused(x, self.w, self.b,
                                             self.wm_t, self.bm)  # [B, T, O]
            return shared_temporal(x, self.w, self.b)             # [B, T, F]

    # Pure-JAX reference for sanity checking.
    def reference(self, x):
        if self.individual:
            y = (jnp.einsum("blf,ftl->btf", x, self.w)
                 + jnp.transpose(self.b, (1, 2, 0)))
        else:
            y = (jnp.einsum("blf,tl->btf", x, self.w)
                 + self.b.reshape(1, self.target_lags, 1))
        if self.use_matching_layer:
            y = jnp.einsum("btf,fo->bto", y, self.wm_t) + self.bm
        return y


if __name__ == "__main__":
    key = jax.random.PRNGKey(0)
    kx, kp1, kp2, kp3, kp4 = jax.random.split(key, 5)

    B, L, T, F, O = 2, 8, 4, 4, 6
    x = jax.random.normal(kx, (B, L, F), dtype=jnp.float32)

    ok = True
    configs = [
        (True, O, kp1),      # individual, with matching layer
        (True, None, kp2),   # individual, no matching layer
        (False, O, kp3),     # shared, with matching layer (fused kernel)
        (False, None, kp4),  # shared, no matching layer
    ]
    for individual, out_size, kp in configs:
        m = LTSFLinear(L, T, F, individual=individual,
                       output_size=out_size, key=kp)
        y = jax.block_until_ready(m(x))
        last = out_size if (out_size is not None and out_size != F) else F
        ok &= (y.shape == (B, T, last))
        ok &= bool(jnp.allclose(y, m.reference(x), atol=1e-5, rtol=1e-5))

    if ok:
        print("KERNEL_OK")
</pallas_src>

<mosaic_0001>
module attributes {stable_mosaic.version = 11 : i64} {
  func.func @_individual_temporal_kernel(%arg0: i32, %arg1: memref<4x2x8xf32, #tpu.memory_space<vmem>>, %arg2: memref<4x4x8xf32, #tpu.memory_space<vmem>>, %arg3: memref<4x1x4xf32, #tpu.memory_space<vmem>>, %arg4: memref<4x2x4xf32, #tpu.memory_space<vmem>>) attributes {dimension_semantics = [#tpu.dimension_semantics<parallel>], iteration_bounds = array<i64: 1>, scalar_prefetch = 0 : i64, scratch_operands = 0 : i64, tpu.core_type = #tpu.core_type<tc>, window_params = [{transform_indices = @transform_0, window_bounds = array<i64: 4, 2, 8>}, {transform_indices = @transform_1, window_bounds = array<i64: 4, 4, 8>}, {transform_indices = @transform_2, window_bounds = array<i64: 4, 1, 4>}, {transform_indices = @transform_3, window_bounds = array<i64: 4, 2, 4>}]} {
    %c0 = arith.constant 0 : index
    %c0_0 = arith.constant 0 : index
    %c0_1 = arith.constant 0 : index
    %0 = vector.load %arg1[%c0, %c0_0, %c0_1] : memref<4x2x8xf32, #tpu.memory_space<vmem>>, vector<4x2x8xf32>
    %c0_2 = arith.constant 0 : index
    %c0_3 = arith.constant 0 : index
    %c0_4 = arith.constant 0 : index
    %1 = vector.load %arg2[%c0_2, %c0_3, %c0_4] : memref<4x4x8xf32, #tpu.memory_space<vmem>>, vector<4x4x8xf32>
    "tpu.trace_start"() <{level = 10 : i32, message = "fbl,ftl->fbt"}> : () -> ()
    %cst = arith.constant dense<0.000000e+00> : vector<4x2x4xf32>
    %2 = tpu.matmul %0, %1, %cst {dimension_numbers = #tpu.dot_dimension_numbers<[2], [2], [1], [1], [0, 0, 0, 1, 1, 1], [0], [0]>} : vector<4x2x8xf32>, vector<4x4x8xf32>, vector<4x2x4xf32> -> vector<4x2x4xf32>
    "tpu.trace_stop"() : () -> ()
    %c0_5 = arith.constant 0 : index
    %c0_6 = arith.constant 0 : index
    %c0_7 = arith.constant 0 : index
    %3 = vector.load %arg3[%c0_5, %c0_6, %c0_7] : memref<4x1x4xf32, #tpu.memory_space<vmem>>, vector<4x1x4xf32>
    %4 = vector.broadcast %3 : vector<4x1x4xf32> to vector<4x2x4xf32>
    %5 = arith.addf %2, %4 : vector<4x2x4xf32>
    %c0_8 = arith.constant 0 : index
    %c0_9 = arith.constant 0 : index
    %c0_10 = arith.constant 0 : index
    %6 = vector.load %arg4[%c0_8, %c0_9, %c0_10] : memref<4x2x4xf32, #tpu.memory_space<vmem>>, vector<4x2x4xf32>
    tpu.vector_store %arg4[%c0_8, %c0_9, %c0_10], %5 {strides = array<i32>} : memref<4x2x4xf32, #tpu.memory_space<vmem>>, vector<4x2x4xf32>,
    return
  }
  func.func @transform_0(%arg0: i32) -> (i32, i32, i32) {
    %c0_i32 = arith.constant 0 : i32
    %c0_i32_0 = arith.constant 0 : i32
    %c0_i32_1 = arith.constant 0 : i32
    return %arg0, %c0_i32, %c0_i32_0 : i32, i32, i32
  }
  func.func @transform_1(%arg0: i32) -> (i32, i32, i32) {
    %c0_i32 = arith.constant 0 : i32
    %c0_i32_0 = arith.constant 0 : i32
    %c0_i32_1 = arith.constant 0 : i32
    return %arg0, %c0_i32, %c0_i32_0 : i32, i32, i32
  }
  func.func @transform_2(%arg0: i32) -> (i32, i32, i32) {
    %c0_i32 = arith.constant 0 : i32
    %c0_i32_0 = arith.constant 0 : i32
    %c0_i32_1 = arith.constant 0 : i32
    return %arg0, %c0_i32, %c0_i32_0 : i32, i32, i32
  }
  func.func @transform_3(%arg0: i32) -> (i32, i32, i32) {
    %c0_i32 = arith.constant 0 : i32
    %c0_i32_0 = arith.constant 0 : i32
    %c0_i32_1 = arith.constant 0 : i32
    return %arg0, %c0_i32, %c0_i32_0 : i32, i32, i32
  }
}

</mosaic_0001>

<llo_original>
// kernel: tpu_custom_call.1
$region0: #{tpu_custom_call.1}
  #allocation0 [shape = 'u32[]', space=smem, size = 0x4, offset = 0x4, fixed_abs, tag = 'smem constant byte address 0x4 - core index']
  #allocation1 [shape = 'u32[144,128]{1,0:T(1,128)}', space=vmem, size = 0x12000, scoped, tag = 'internal scratch']
  %s0 = inlined_call_operand.hbm [shape: f32[4,2,8], index: 0, kind: input, shape index: {}]
  %s1 = inlined_call_operand.hbm [shape: f32[4,4,8], index: 1, kind: input, shape index: {}]
  %s2 = inlined_call_operand.vmem [shape: f32[4,1,4], index: 2, kind: input, shape index: {}]
  %s3 = inlined_call_operand.hbm [shape: f32[4,2,4], index: 3, kind: output, shape index: {}]
  %s4 = sld [smem:[#allocation0]]
  $region30: #{tpu_custom_call.1} parent=0
    _
  %s6 = ssub.s32 1, %s4
  %s7 = scalar_select 0, %s6, %s4
  $region1: #{tpu_custom_call.1} parent=0
    #allocation2 [shape = 'u8[4096]{0}', space=vmem, size = 0x1000, scoped, tag = 'input window, operand 0, single buffered']
    #allocation3 [shape = 's32[1]{0}', space=sflag, size = 0x4, scoped, tag = 'scoped memory for tpu_custom_call.1']
    #allocation4 [shape = 's32[1]{0}', space=sflag, size = 0x4, scoped, tag = 'scoped memory for tpu_custom_call.1']
    #allocation5 [shape = 'u8[8192]{0}', space=vmem, size = 0x2000, scoped, tag = 'input window, operand 1, single buffered']
    #allocation6 [shape = 's32[1]{0}', space=sflag, size = 0x4, scoped, tag = 'scoped memory for tpu_custom_call.1']
    #allocation7 [shape = 'u8[4096]{0}', space=vmem, size = 0x1000, scoped, tag = 'output window, operand 0, single buffered']
    %8 = vsyncpa [#allocation3], 0
    %9 = vsyncpa [#allocation6], 0
    %10 = vsyncpa [#allocation4], 0
    // Predicated region
    $region2: #{tpu_custom_call.1} parent=1 // pred_check
      _
    $region3: #{tpu_custom_call.1} parent=1 // pred_check_branch
      %12 = sbr.rel (0) target = $region5
    $region4: #{tpu_custom_call.1} parent=1 // pred_region
      %s14 = ssub.s32 128, 128
      %15 = vsyncadd [#allocation3], %s14
      %s16 = sshll.u32 [#allocation2], 4
      %s17 = int_to_ptr.vmem [resolvable:$true] %s16
      %22 = dma.hbm_to_vmem [thread:$0]  %s0, 128, %s17, [#allocation3], 32, 32, 2
    $region5: #{tpu_custom_call.1} parent=1 // pred_fallthru
      _
    // Predicated region
    $region6: #{tpu_custom_call.1} parent=1 // pred_check
      _
    $region7: #{tpu_custom_call.1} parent=1 // pred_check_branch
      %24 = sbr.rel (0) target = $region9
    $region8: #{tpu_custom_call.1} parent=1 // pred_region
      %s26 = ssub.s32 256, 256
      %27 = vsyncadd [#allocation6], %s26
      %s28 = sshll.u32 [#allocation5], 4
      %s29 = int_to_ptr.vmem [resolvable:$true] %s28
      %34 = dma.hbm_to_vmem [thread:$0]  %s1, 256, %s29, [#allocation6], 64, 64, 4
    $region9: #{tpu_custom_call.1} parent=1 // pred_fallthru
      _
    // Predicated region
    $region10: #{tpu_custom_call.1} parent=1 // pred_check
      _
    $region11: #{tpu_custom_call.1} parent=1 // pred_check_branch
      %36 = sbr.rel (0) target = $region13
    $region12: #{tpu_custom_call.1} parent=1 // pred_region
      _
    $region13: #{tpu_custom_call.1} parent=1 // pred_fallthru
      _
    // Predicated region
    $region14: #{tpu_custom_call.1} parent=1 // pred_check
      _
    $region15: #{tpu_custom_call.1} parent=1 // pred_check_branch
      %38 = sbr.rel (0) target = $region17
    $region16: #{tpu_custom_call.1} parent=1 // pred_region
      %39 = dma.done [#allocation3], 128
    $region17: #{tpu_custom_call.1} parent=1 // pred_fallthru
      _
    // Predicated region
    $region18: #{tpu_custom_call.1} parent=1 // pred_check
      _
    $region19: #{tpu_custom_call.1} parent=1 // pred_check_branch
      %41 = sbr.rel (0) target = $region21
    $region20: #{tpu_custom_call.1} parent=1 // pred_region
      %42 = dma.done [#allocation6], 256
    $region21: #{tpu_custom_call.1} parent=1 // pred_fallthru
      _
    %v43 = vld [vmem:[#allocation2] sm:$0x3]
    %v44 = vld [vmem:[#allocation2 + $0x2] sm:$0x3]
    %v45 = vld [vmem:[#allocation2 + $0x4] sm:$0x3]
    %v46 = vld [vmem:[#allocation2 + $0x6] sm:$0x3]
    %v47 = vld [vmem:[#allocation5] sm:$0xf]
    %v48 = vld [vmem:[#allocation5 + $0x4] sm:$0xf]
    %v49 = vld [vmem:[#allocation5 + $0x8] sm:$0xf]
    %v50 = vld [vmem:[#allocation5 + $0xc] sm:$0xf]
    %v51 = vld [vmem:[%s2] sm:$0x1]
    %v52 = vld [vmem:[%s2 + $0x1] sm:$0x1]
    %v53 = vld [vmem:[%s2 + $0x2] sm:$0x1]
    %v54 = vld [vmem:[%s2 + $0x3] sm:$0x1]
    %v59 = vlaneseq
    %v60 = vshrl.u32 %v59, 7
    %v61 = vsub.s32 0, %v60
    %v62 = vrot.slane %v51, %v61
    %v63 = vlaneseq
    %v64 = vshrl.u32 %v63, 7
    %v65 = vsub.s32 0, %v64
    %v66 = vrot.slane %v52, %v65
    %v67 = vlaneseq
    %v68 = vshrl.u32 %v67, 7
    %v69 = vsub.s32 0, %v68
    %v70 = vrot.slane %v53, %v69
    %v71 = vlaneseq
    %v72 = vshrl.u32 %v71, 7
    %v73 = vsub.s32 0, %v72
    %v74 = vrot.slane %v54, %v73
    %vm79 = vcmask 64512
    %v81 = vsel %vm79, %v43, 0
    %v84 = vsel %vm79, %v47, 0
    %86 = vmatprep.subr.mxu0 0.0
    %87 = vmatpush1.xpose.msra.mxu0 %v84
    %88 = vmatprep.subr.mxu0 0.0
    %89 = vmatpush1.xpose.msra.mxu0 0.0
    %90 = vmatprep.subr.mxu0 0.0
    %91 = vmatpush1.xpose.msra.mxu0 0.0
    %92 = vmatprep.subr.mxu0 0.0
    %93 = vmatpush1.xpose.msra.mxu0 0.0
    %94 = vmatprep.subr.mxu0 0.0
    %95 = vmatpush1.xpose.msra.mxu0 0.0
    %96 = vmatprep.subr.mxu0 0.0
    %97 = vmatpush1.xpose.msra.mxu0 0.0
    %98 = vmatprep.subr.mxu0 0.0
    %99 = vmatpush1.xpose.msra.mxu0 0.0
    %100 = vmatprep.subr.mxu0 0.0
    %101 = vmatpush1.xpose.msra.mxu0 0.0
    %102 = vmatprep.subr.mxu0 0.0
    %103 = vmatpush1.xpose.msra.mxu0 0.0
    %104 = vmatprep.subr.mxu0 0.0
    %105 = vmatpush1.xpose.msra.mxu0 0.0
    %106 = vmatprep.subr.mxu0 0.0
    %107 = vmatpush1.xpose.msra.mxu0 0.0
    %108 = vmatprep.subr.mxu0 0.0
    %109 = vmatpush1.xpose.msra.mxu0 0.0
    %110 = vmatprep.subr.mxu0 0.0
    %111 = vmatpush1.xpose.msra.mxu0 0.0
    %112 = vmatprep.subr.mxu0 0.0
    %113 = vmatpush1.xpose.msra.mxu0 0.0
    %114 = vmatprep.subr.mxu0 0.0
    %115 = vmatpush1.xpose.msra.mxu0 0.0
    %116 = vmatprep.subr.mxu0 0.0
    %117 = vmatpush1.xpose.msra.mxu0 0.0
    %118 = vmatprep.subr.mxu0 0.0
    %119 = vmatpush1.xpose.msra.mxu0 0.0
    %120 = vmatprep.subr.mxu0 0.0
    %121 = vmatpush1.xpose.msra.mxu0 0.0
    %122 = vmatprep.subr.mxu0 0.0
    %123 = vmatpush1.xpose.msra.mxu0 0.0
    %124 = vmatprep.subr.mxu0 0.0
    %125 = vmatpush1.xpose.msra.mxu0 0.0
    %126 = vmatprep.subr.mxu0 0.0
    %127 = vmatpush1.xpose.msra.mxu0 0.0
    %128 = vmatprep.subr.mxu0 0.0
    %129 = vmatpush1.xpose.msra.mxu0 0.0
    %130 = vmatprep.subr.mxu0 0.0
    %131 = vmatpush1.xpose.msra.mxu0 0.0
    %132 = vmatprep.subr.mxu0 0.0
    %133 = vmatpush1.xpose.msra.mxu0 0.0
    %134 = vmatprep.subr.mxu0 0.0
    %135 = vmatpush1.xpose.msra.mxu0 0.0
    %136 = vmatprep.subr.mxu0 0.0
    %137 = vmatpush1.xpose.msra.mxu0 0.0
    %138 = vmatprep.subr.mxu0 0.0
    %139 = vmatpush1.xpose.msra.mxu0 0.0
    %140 = vmatprep.subr.mxu0 0.0
    %141 = vmatpush1.xpose.msra.mxu0 0.0
    %142 = vmatprep.subr.mxu0 0.0
    %143 = vmatpush1.xpose.msra.mxu0 0.0
    %144 = vmatprep.subr.mxu0 0.0
    %145 = vmatpush1.xpose.msra.mxu0 0.0
    %146 = vmatprep.subr.mxu0 0.0
    %147 = vmatpush1.xpose.msra.mxu0 0.0
    %148 = vmatprep.subr.mxu0 0.0
    %149 = vmatpush1.xpose.msra.mxu0 0.0
    %150 = vmatprep.mubr.f32.mxu0 0.0
    %151 = vmatmul.mubr.f32.gmra.mrb[0].mxu0 %v81
    %v152 = vpop.f32.mrb[0].mxu0
    %v153 = vadd.f32 %v62, %v152
    %v154 = vpop.f32.mrb[0].mxu0
    %155 = vdwg.mxu0
    %v157 = vsel %vm79, %v44, 0
    %v160 = vsel %vm79, %v48, 0
    %162 = vmatprep.subr.mxu0 0.0
    %163 = vmatpush1.xpose.msra.mxu0 %v160
    %164 = vmatprep.subr.mxu0 0.0
    %165 = vmatpush1.xpose.msra.mxu0 0.0
    %166 = vmatprep.subr.mxu0 0.0
    %167 = vmatpush1.xpose.msra.mxu0 0.0
    %168 = vmatprep.subr.mxu0 0.0
    %169 = vmatpush1.xpose.msra.mxu0 0.0
    %170 = vmatprep.subr.mxu0 0.0
    %171 = vmatpush1.xpose.msra.mxu0 0.0
    %172 = vmatprep.subr.mxu0 0.0
    %173 = vmatpush1.xpose.msra.mxu0 0.0
    %174 = vmatprep.subr.mxu0 0.0
    %175 = vmatpush1.xpose.msra.mxu0 0.0
    %176 = vmatprep.subr.mxu0 0.0
    %177 = vmatpush1.xpose.msra.mxu0 0.0
    %178 = vmatprep.subr.mxu0 0.0
    %179 = vmatpush1.xpose.msra.mxu0 0.0
    %180 = vmatprep.subr.mxu0 0.0
    %181 = vmatpush1.xpose.msra.mxu0 0.0
    %182 = vmatprep.subr.mxu0 0.0
    %183 = vmatpush1.xpose.msra.mxu0 0.0
    %184 = vmatprep.subr.mxu0 0.0
    %185 = vmatpush1.xpose.msra.mxu0 0.0
    %186 = vmatprep.subr.mxu0 0.0
    %187 = vmatpush1.xpose.msra.mxu0 0.0
    %188 = vmatprep.subr.mxu0 0.0
    %189 = vmatpush1.xpose.msra.mxu0 0.0
    %190 = vmatprep.subr.mxu0 0.0
    %191 = vmatpush1.xpose.msra.mxu0 0.0
    %192 = vmatprep.subr.mxu0 0.0
    %193 = vmatpush1.xpose.msra.mxu0 0.0
    %194 = vmatprep.subr.mxu0 0.0
    %195 = vmatpush1.xpose.msra.mxu0 0.0
    %196 = vmatprep.subr.mxu0 0.0
    %197 = vmatpush1.xpose.msra.mxu0 0.0
    %198 = vmatprep.subr.mxu0 0.0
    %199 = vmatpush1.xpose.msra.mxu0 0.0
    %200 = vmatprep.subr.mxu0 0.0
    %201 = vmatpush1.xpose.msra.mxu0 0.0
    %202 = vmatprep.subr.mxu0 0.0
    %203 = vmatpush1.xpose.msra.mxu0 0.0
    %204 = vmatprep.subr.mxu0 0.0
    %205 = vmatpush1.xpose.msra.mxu0 0.0
    %206 = vmatprep.subr.mxu0 0.0
    %207 = vmatpush1.xpose.msra.mxu0 0.0
    %208 = vmatprep.subr.mxu0 0.0
    %209 = vmatpush1.xpose.msra.mxu0 0.0
    %210 = vmatprep.subr.mxu0 0.0
    %211 = vmatpush1.xpose.msra.mxu0 0.0
    %212 = vmatprep.subr.mxu0 0.0
    %213 = vmatpush1.xpose.msra.mxu0 0.0
    %214 = vmatprep.subr.mxu0 0.0
    %215 = vmatpush1.xpose.msra.mxu0 0.0
    %216 = vmatprep.subr.mxu0 0.0
    %217 = vmatpush1.xpose.msra.mxu0 0.0
    %218 = vmatprep.subr.mxu0 0.0
    %219 = vmatpush1.xpose.msra.mxu0 0.0
    %220 = vmatprep.subr.mxu0 0.0
    %221 = vmatpush1.xpose.msra.mxu0 0.0
    %222 = vmatprep.subr.mxu0 0.0
    %223 = vmatpush1.xpose.msra.mxu0 0.0
    %224 = vmatprep.subr.mxu0 0.0
    %225 = vmatpush1.xpose.msra.mxu0 0.0
    %226 = vmatprep.mubr.f32.mxu0 0.0
    %227 = vmatmul.mubr.f32.gmra.mrb[0].mxu0 %v157
    %v228 = vpop.f32.mrb[0].mxu0
    %v229 = vadd.f32 %v66, %v228
    %v230 = vpop.f32.mrb[0].mxu0
    %231 = vdwg.mxu0
    %v233 = vsel %vm79, %v45, 0
    %v236 = vsel %vm79, %v49, 0
    %238 = vmatprep.subr.mxu0 0.0
    %239 = vmatpush1.xpose.msra.mxu0 %v236
    %240 = vmatprep.subr.mxu0 0.0
    %241 = vmatpush1.xpose.msra.mxu0 0.0
    %242 = vmatprep.subr.mxu0 0.0
    %243 = vmatpush1.xpose.msra.mxu0 0.0
    %244 = vmatprep.subr.mxu0 0.0
    %245 = vmatpush1.xpose.msra.mxu0 0.0
    %246 = vmatprep.subr.mxu0 0.0
    %247 = vmatpush1.xpose.msra.mxu0 0.0
    %248 = vmatprep.subr.mxu0 0.0
    %249 = vmatpush1.xpose.msra.mxu0 0.0
    %250 = vmatprep.subr.mxu0 0.0
    %251 = vmatpush1.xpose.msra.mxu0 0.0
    %252 = vmatprep.subr.mxu0 0.0
    %253 = vmatpush1.xpose.msra.mxu0 0.0
    %254 = vmatprep.subr.mxu0 0.0
    %255 = vmatpush1.xpose.msra.mxu0 0.0
    %256 = vmatprep.subr.mxu0 0.0
    %257 = vmatpush1.xpose.msra.mxu0 0.0
    %258 = vmatprep.subr.mxu0 0.0
    %259 = vmatpush1.xpose.msra.mxu0 0.0
    %260 = vmatprep.subr.mxu0 0.0
    %261 = vmatpush1.xpose.msra.mxu0 0.0
    %262 = vmatprep.subr.mxu0 0.0
    %263 = vmatpush1.xpose.msra.mxu0 0.0
    %264 = vmatprep.subr.mxu0 0.0
    %265 = vmatpush1.xpose.msra.mxu0 0.0
    %266 = vmatprep.subr.mxu0 0.0
    %267 = vmatpush1.xpose.msra.mxu0 0.0
    %268 = vmatprep.subr.mxu0 0.0
    %269 = vmatpush1.xpose.msra.mxu0 0.0
    %270 = vmatprep.subr.mxu0 0.0
    %271 = vmatpush1.xpose.msra.mxu0 0.0
    %272 = vmatprep.subr.mxu0 0.0
    %273 = vmatpush1.xpose.msra.mxu0 0.0
    %274 = vmatprep.subr.mxu0 0.0
    %275 = vmatpush1.xpose.msra.mxu0 0.0
    %276 = vmatprep.subr.mxu0 0.0
    %277 = vmatpush1.xpose.msra.mxu0 0.0
    %278 = vmatprep.subr.mxu0 0.0
    %279 = vmatpush1.xpose.msra.mxu0 0.0
    %280 = vmatprep.subr.mxu0 0.0
    %281 = vmatpush1.xpose.msra.mxu0 0.0
    %282 = vmatprep.subr.mxu0 0.0
    %283 = vmatpush1.xpose.msra.mxu0 0.0
    %284 = vmatprep.subr.mxu0 0.0
    %285 = vmatpush1.xpose.msra.mxu0 0.0
    %286 = vmatprep.subr.mxu0 0.0
    %287 = vmatpush1.xpose.msra.mxu0 0.0
    %288 = vmatprep.subr.mxu0 0.0
    %289 = vmatpush1.xpose.msra.mxu0 0.0
    %290 = vmatprep.subr.mxu0 0.0
    %291 = vmatpush1.xpose.msra.mxu0 0.0
    %292 = vmatprep.subr.mxu0 0.0
    %293 = vmatpush1.xpose.msra.mxu0 0.0
    %294 = vmatprep.subr.mxu0 0.0
    %295 = vmatpush1.xpose.msra.mxu0 0.0
    %296 = vmatprep.subr.mxu0 0.0
    %297 = vmatpush1.xpose.msra.mxu0 0.0
    %298 = vmatprep.subr.mxu0 0.0
    %299 = vmatpush1.xpose.msra.mxu0 0.0
    %300 = vmatprep.subr.mxu0 0.0
    %301 = vmatpush1.xpose.msra.mxu0 0.0
    %302 = vmatprep.mubr.f32.mxu0 0.0
    %303 = vmatmul.mubr.f32.gmra.mrb[0].mxu0 %v233
    %v304 = vpop.f32.mrb[0].mxu0
    %v305 = vadd.f32 %v70, %v304
    %v306 = vpop.f32.mrb[0].mxu0
    %307 = vdwg.mxu0
    %v309 = vsel %vm79, %v46, 0
    %v312 = vsel %vm79, %v50, 0
    %314 = vmatprep.subr.mxu0 0.0
    %315 = vmatpush1.xpose.msra.mxu0 %v312
    %316 = vmatprep.subr.mxu0 0.0
    %317 = vmatpush1.xpose.msra.mxu0 0.0
    %318 = vmatprep.subr.mxu0 0.0
    %319 = vmatpush1.xpose.msra.mxu0 0.0
    %320 = vmatprep.subr.mxu0 0.0
    %321 = vmatpush1.xpose.msra.mxu0 0.0
    %322 = vmatprep.subr.mxu0 0.0
    %323 = vmatpush1.xpose.msra.mxu0 0.0
    %324 = vmatprep.subr.mxu0 0.0
    %325 = vmatpush1.xpose.msra.mxu0 0.0
    %326 = vmatprep.subr.mxu0 0.0
    %327 = vmatpush1.xpose.msra.mxu0 0.0
    %328 = vmatprep.subr.mxu0 0.0
    %329 = vmatpush1.xpose.msra.mxu0 0.0
    %330 = vmatprep.subr.mxu0 0.0
    %331 = vmatpush1.xpose.msra.mxu0 0.0
    %332 = vmatprep.subr.mxu0 0.0
    %333 = vmatpush1.xpose.msra.mxu0 0.0
    %334 = vmatprep.subr.mxu0 0.0
    %335 = vmatpush1.xpose.msra.mxu0 0.0
    %336 = vmatprep.subr.mxu0 0.0
    %337 = vmatpush1.xpose.msra.mxu0 0.0
    %338 = vmatprep.subr.mxu0 0.0
    %339 = vmatpush1.xpose.msra.mxu0 0.0
    %340 = vmatprep.subr.mxu0 0.0
    %341 = vmatpush1.xpose.msra.mxu0 0.0
    %342 = vmatprep.subr.mxu0 0.0
    %343 = vmatpush1.xpose.msra.mxu0 0.0
    %344 = vmatprep.subr.mxu0 0.0
    %345 = vmatpush1.xpose.msra.mxu0 0.0
    %346 = vmatprep.subr.mxu0 0.0
    %347 = vmatpush1.xpose.msra.mxu0 0.0
    %348 = vmatprep.subr.mxu0 0.0
    %349 = vmatpush1.xpose.msra.mxu0 0.0
    %350 = vmatprep.subr.mxu0 0.0
    %351 = vmatpush1.xpose.msra.mxu0 0.0
    %352 = vmatprep.subr.mxu0 0.0
    %353 = vmatpush1.xpose.msra.mxu0 0.0
    %354 = vmatprep.subr.mxu0 0.0
    %355 = vmatpush1.xpose.msra.mxu0 0.0
    %356 = vmatprep.subr.mxu0 0.0
    %357 = vmatpush1.xpose.msra.mxu0 0.0
    %358 = vmatprep.subr.mxu0 0.0
    %359 = vmatpush1.xpose.msra.mxu0 0.0
    %360 = vmatprep.subr.mxu0 0.0
    %361 = vmatpush1.xpose.msra.mxu0 0.0
    %362 = vmatprep.subr.mxu0 0.0
    %363 = vmatpush1.xpose.msra.mxu0 0.0
    %364 = vmatprep.subr.mxu0 0.0
    %365 = vmatpush1.xpose.msra.mxu0 0.0
    %366 = vmatprep.subr.mxu0 0.0
    %367 = vmatpush1.xpose.msra.mxu0 0.0
    %368 = vmatprep.subr.mxu0 0.0
    %369 = vmatpush1.xpose.msra.mxu0 0.0
    %370 = vmatprep.subr.mxu0 0.0
    %371 = vmatpush1.xpose.msra.mxu0 0.0
    %372 = vmatprep.subr.mxu0 0.0
    %373 = vmatpush1.xpose.msra.mxu0 0.0
    %374 = vmatprep.subr.mxu0 0.0
    %375 = vmatpush1.xpose.msra.mxu0 0.0
    %376 = vmatprep.subr.mxu0 0.0
    %377 = vmatpush1.xpose.msra.mxu0 0.0
    %378 = vmatprep.mubr.f32.mxu0 0.0
    %379 = vmatmul.mubr.f32.gmra.mrb[0].mxu0 %v309
    %v380 = vpop.f32.mrb[0].mxu0
    %v381 = vadd.f32 %v74, %v380
    %v382 = vpop.f32.mrb[0].mxu0
    %383 = vdwg.mxu0
    %vm384 = vcmask 25600
    %385 = vst.msk [vmem:[#allocation7] sm:$0x3] %vm384, %v153
    %386 = vst.msk [vmem:[#allocation7 + $0x2] sm:$0x3] %vm384, %v229
    %387 = vst.msk [vmem:[#allocation7 + $0x4] sm:$0x3] %vm384, %v305
    %388 = vst.msk [vmem:[#allocation7 + $0x6] sm:$0x3] %vm384, %v381
    // Predicated region
    $region22: #{tpu_custom_call.1} parent=1 // pred_check
      _
    $region23: #{tpu_custom_call.1} parent=1 // pred_check_branch
      %390 = sbr.rel (0) target = $region25
    $region24: #{tpu_custom_call.1} parent=1 // pred_region
      %s392 = ssub.s32 128, 128
      %393 = vsyncadd [#allocation4], %s392
      %s394 = sshll.u32 [#allocation7], 4
      %s395 = int_to_ptr.vmem [resolvable:$true] %s394
      %400 = dma.vmem_to_hbm [thread:$0]  %s395, 128, %s3, [#allocation4], 32, 32, 2
    $region25: #{tpu_custom_call.1} parent=1 // pred_fallthru
      _
    // Predicated region
    $region26: #{tpu_custom_call.1} parent=1 // pred_check
      _
    $region27: #{tpu_custom_call.1} parent=1 // pred_check_branch
      %402 = sbr.rel (0) target = $region29
    $region28: #{tpu_custom_call.1} parent=1 // pred_region
      %403 = dma.done [#allocation4], 128
    $region29: #{tpu_custom_call.1} parent=1 // pred_fallthru
      _
    %404 = vsyncpa [#allocation3], 1
    %405 = vsyncpa [#allocation6], 1
    %406 = vsyncpa [#allocation4], 1

</llo_original>
